<compile_context>
chip_gen: v6e
topology: v6e:2x2x1
jax: 0.10.0
libtpu: 0.0.40
codegen_flags: <defaults>
</compile_context>

<pallas_src>
import functools

import jax
import jax.numpy as jnp
from jax import lax
from jax.experimental import pallas as pl
from jax.experimental.pallas import tpu as pltpu

LANE = 128  # TPU lane width; channel tiles are multiples of this.


@functools.cache
def _roll_is_forward():
    """True iff pltpu.roll(x, 1, axis=0)[i] == x[i-1] (jnp.roll convention).

    Probed once on the real backend so the W-shift direction can never be
    silently mirrored; falls back to the documented jnp.roll convention.
    """
    def probe(x_ref, o_ref):
        o_ref[...] = pltpu.roll(x_ref[...], 1, axis=0)

    try:
        x = jnp.arange(8 * 128, dtype=jnp.float32).reshape(8, 128)
        y = pl.pallas_call(
            probe, out_shape=jax.ShapeDtypeStruct((8, 128), jnp.float32))(x)
        return bool(jnp.all(y[1] == x[0]))
    except Exception:
        return True


def _vmem_capacity_bytes():
    """Physical VMEM per TensorCore; conservative v7x value if undetectable."""
    try:
        return int(pltpu.get_tpu_info().vmem_capacity_bytes)
    except Exception:
        return 64 * 1024 * 1024


def _largest_divisor_leq(n, cap):
    cap = max(1, min(n, cap))
    for d in range(cap, 0, -1):
        if n % d == 0:
            return d
    return 1


def dwconv_kernel(x_ref, xtop_ref, xbot_ref, w_ref, b_ref, o_ref, *, roll_fwd):
    """3x3 depthwise conv on one (batch, C-tile, H-tile) block, NHWC layout.

    x_ref   : (TH, W, TC)  rows [h*TH, h*TH+TH) of one channel tile
    xtop_ref: (1, W, TC)   row h*TH-1   (clamped; zeroed in-kernel when h == 0)
    xbot_ref: (1, W, TC)   row h*TH+TH  (clamped; zeroed when h == nH-1)
    w_ref   : (9, TC)      depthwise taps, row-major (dh*3 + dw)
    b_ref   : (1, TC)      bias
    o_ref   : (TH, W, TC)  output block
    """
    TH, W, TC = o_ref.shape
    h = pl.program_id(2)
    nH = pl.num_programs(2)
    f32 = jnp.float32

    # Hoisted per-block constants (JAX does not CSE broadcasts inside loops).
    w9 = w_ref[...].astype(f32)                           # (9, TC)
    taps = [w9[k:k + 1, :] for k in range(9)]             # 9 x (1, TC)
    bias = b_ref[...].astype(f32)                         # (1, TC)
    col = lax.broadcasted_iota(jnp.int32, (W, 1), 0)
    not_first = (col > 0).astype(f32)                     # zeros column w == 0
    not_last = (col < W - 1).astype(f32)                  # zeros column w == W-1

    # Halo rows: zero "same" padding at the image top/bottom.  A scalar 0/1
    # multiply on a single row per block (interior rows never touch halos), so a
    # pl.when split of the row-0/row-TH-1 computation is not worth the code.
    top = xtop_ref[...].astype(f32) * (h > 0).astype(f32)          # (1, W, TC)
    bot = xbot_ref[...].astype(f32) * (h < nH - 1).astype(f32)     # (1, W, TC)

    # Shift amounts along W for pltpu.roll, honouring the probed convention.
    sh_prev = 1 if roll_fwd else (W - 1)      # out[w] <- v[w-1]
    sh_next = (W - 1) if roll_fwd else 1      # out[w] <- v[w+1]

    def compute_row(t, m, b_):
        """9-tap sum for one output row, accumulated in vregs, one store."""
        # Group taps by their W offset, combine the three rows per group first.
        c = t * taps[1] + m * taps[4] + b_ * taps[7] + bias   # dw == 1 (aligned)
        if W > 1:
            l = t * taps[0] + m * taps[3] + b_ * taps[6]      # dw == 0: x[w-1]
            r = t * taps[2] + m * taps[5] + b_ * taps[8]      # dw == 2: x[w+1]
            # One XLU roll per group; zero the single wrapped boundary column.
            c += pltpu.roll(l, sh_prev, axis=1) * not_first
            c += pltpu.roll(r, sh_next, axis=1) * not_last
        return c.astype(o_ref.dtype)

    def rows(r):                    # (1, W, TC) f32; r may be static or dynamic
        return x_ref[pl.ds(r, 1)].astype(f32)

    if TH == 1:
        o_ref[pl.ds(0, 1)] = compute_row(top, rows(0), bot)
    else:
        # First row of the tile: its "above" neighbour is the top halo.
        o_ref[pl.ds(0, 1)] = compute_row(top, rows(0), rows(1))

        def body(r, carry):
            o_ref[pl.ds(r, 1)] = compute_row(rows(r - 1), rows(r), rows(r + 1))
            return carry

        lax.fori_loop(1, TH - 1, body, 0)

        # Last row of the tile: its "below" neighbour is the bottom halo.
        o_ref[pl.ds(TH - 1, 1)] = compute_row(rows(TH - 2), rows(TH - 1), bot)


def dwconv(x, weight, bias, H, W, max_rows=None):
    """Depthwise 3x3 conv, stride 1, padding 1, groups=C, with bias (DWConv).

    x: (B, N, C) with N = H*W; weight: (3, 3, C) (PyTorch (C,1,3,3) transposed);
    bias: (C,).  Returns (B, N, C).  IO runs in x.dtype - bf16 is the fast path
    on v6e/v7x (the kernel is HBM-bound); accumulation is always f32.
    """
    return _dwconv_impl(x, weight, bias, H=H, W=W, max_rows=max_rows,
                        roll_fwd=_roll_is_forward())


@functools.partial(jax.jit, static_argnames=("H", "W", "max_rows", "roll_fwd"))
def _dwconv_impl(x, weight, bias, *, H, W, max_rows, roll_fwd):
    B, N, C = x.shape
    assert N == H * W, "N must equal H*W"
    assert weight.shape == (3, 3, C) and bias.shape == (C,)

    # Lane-align channels so stores are lane-dense.  Real Mix-FFN dims
    # (256..2048) are already multiples of 128 -> no-op there.
    C_pad = pl.cdiv(C, LANE) * LANE
    if C_pad != C:
        x = jnp.pad(x, ((0, 0), (0, 0), (0, C_pad - C)))
        weight = jnp.pad(weight, ((0, 0), (0, 0), (0, C_pad - C)))
        bias = jnp.pad(bias, ((0, C_pad - C),))

    vmem_cap = _vmem_capacity_bytes()
    big_vmem = vmem_cap >= 100 * 1024 * 1024          # v5e / v6e (128 MiB)

    # Channel tile: wider tiles give longer contiguous HBM runs and fewer halo
    # DMAs, but keep one (W, TC) f32 row small enough to live mostly in vregs.
    tc_cap = 512 if big_vmem else 256
    reg_cap = max(LANE, (8192 // max(W, 1)) // LANE * LANE)
    TC = min(C_pad, tc_cap, reg_cap)
    TC = max(LANE, (TC // LANE) * LANE)
    while C_pad % TC:
        TC -= LANE
    nC = C_pad // TC

    # H tile: the biggest block that double-buffers comfortably in scoped VMEM
    # (bigger on v5e/v6e, tighter on v7x's 64 MiB).
    elem_budget = (2 * 1024 * 1024) if big_vmem else (512 * 1024)
    rows_cap = max(1, elem_budget // (W * TC))
    if max_rows is not None:
        rows_cap = min(rows_cap, max_rows)
    TH = min(H, rows_cap)
    th_div = _largest_divisor_leq(H, rows_cap)
    if 2 * th_div >= TH:          # a decent exact divisor exists -> no H padding
        TH = th_div
    nH = pl.cdiv(H, TH)
    # Megacore (v7x: 2 TCs/chip): guarantee >= 2 parallel grid steps.
    if B * nC * nH < 2 and H >= 2:
        TH = pl.cdiv(H, 2)
        nH = 2
    H_pad = nH * TH

    x_img = x.reshape(B, H, W, C_pad)
    if H_pad != H:
        # Zero rows reproduce the conv's zero "same" padding for row H-1.
        x_img = jnp.pad(x_img, ((0, 0), (0, H_pad - H), (0, 0), (0, 0)))
    w9 = weight.reshape(9, C_pad)             # taps hoisted as (9, C) per review
    bias2 = bias.reshape(1, C_pad)

    # Right-size the VMEM budget from the actual buffers (2x headroom), instead
    # of a hard-coded 48 MiB.
    itemsize = jnp.dtype(x.dtype).itemsize
    blk_bytes = TH * W * TC * itemsize
    halo_bytes = W * TC * itemsize
    wgt_bytes = 10 * C_pad * 4
    need = 2 * (2 * blk_bytes + 2 * halo_bytes) + 2 * wgt_bytes
    vmem_limit = int(min(max(2 * need, 16 * 1024 * 1024),
                         (96 if big_vmem else 32) * 1024 * 1024))

    kernel = functools.partial(dwconv_kernel, roll_fwd=roll_fwd)

    out = pl.pallas_call(
        kernel,
        out_shape=jax.ShapeDtypeStruct((B, H_pad, W, C_pad), x.dtype),
        grid_spec=pltpu.PrefetchScalarGridSpec(
            num_scalar_prefetch=0,
            grid=(B, nC, nH),
            in_specs=[
                # Main rows of this (batch, C-tile, H-tile).
                pl.BlockSpec((None, TH, W, TC), lambda b, c, h: (b, h, 0, c)),
                # One-row halo above (clamped at the top edge; zeroed in-kernel).
                pl.BlockSpec(
                    (None, 1, W, TC),
                    lambda b, c, h: (b, jnp.maximum(h * TH - 1, 0), 0, c)),
                # One-row halo below (clamped at the bottom edge; zeroed in-kernel).
                pl.BlockSpec(
                    (None, 1, W, TC),
                    lambda b, c, h: (b, jnp.minimum(h * TH + TH, H_pad - 1), 0, c)),
                pl.BlockSpec((9, TC), lambda b, c, h: (0, c)),
                pl.BlockSpec((1, TC), lambda b, c, h: (0, c)),
            ],
            out_specs=pl.BlockSpec((None, TH, W, TC), lambda b, c, h: (b, h, 0, c)),
        ),
        compiler_params=pltpu.CompilerParams(
            dimension_semantics=("parallel", "parallel", "parallel"),
            vmem_limit_bytes=vmem_limit,
        ),
    )(x_img, x_img, x_img, w9, bias2)

    out = out[:, :H].reshape(B, N, C_pad)
    return out[:, :, :C] if C_pad != C else out


def _reference(x, weight, bias, H, W):
    """Pure-JAX depthwise 3x3 conv reference (zero padding), f32."""
    B, N, C = x.shape
    xi = x.astype(jnp.float32).reshape(B, H, W, C)
    xp = jnp.pad(xi, ((0, 0), (1, 1), (1, 1), (0, 0)))
    ref = jnp.zeros((B, H, W, C), jnp.float32)
    for dh in range(3):
        for dw in range(3):
            ref = ref + xp[:, dh:dh + H, dw:dw + W, :] * weight[dh, dw, :].astype(jnp.float32)
    return (ref + bias.astype(jnp.float32)).reshape(B, N, C)


if __name__ == "__main__":
    # Config 1: the module's toy shapes (B=2, C=4, H=W=16, N=256).
    B, C, H, W = 2, 4, 16, 16
    kx, kw, kb = jax.random.split(jax.random.PRNGKey(0), 3)
    x = jax.random.normal(kx, (B, H * W, C), dtype=jnp.float32)
    # PyTorch depthwise weight layout is (C, 1, 3, 3); the kernel uses (3, 3, C).
    w_torch = jax.random.normal(kw, (C, 1, 3, 3), dtype=jnp.float32) * 0.1
    weight = jnp.transpose(w_torch[:, 0, :, :], (1, 2, 0))
    bias = jax.random.normal(kb, (C,), dtype=jnp.float32) * 0.1

    ref = _reference(x, weight, bias, H, W)

    out = jax.block_until_ready(dwconv(x, weight, bias, H=H, W=W))
    assert jnp.allclose(out, ref, atol=1e-5, rtol=1e-5), "f32 mismatch"

    # Same shapes, but force H tiling (4 row-tiles) to exercise the halo path.
    out_t = jax.block_until_ready(dwconv(x, weight, bias, H=H, W=W, max_rows=4))
    assert jnp.allclose(out_t, ref, atol=1e-5, rtol=1e-5), "H-tiled mismatch"

    # bf16 IO (f32 accumulation in-register) smoke test: the fast path on v6e/v7x.
    out_bf = jax.block_until_ready(
        dwconv(x.astype(jnp.bfloat16), weight.astype(jnp.bfloat16),
               bias.astype(jnp.bfloat16), H=H, W=W))
    assert jnp.allclose(out_bf.astype(jnp.float32), ref, atol=5e-2, rtol=5e-2), \
        "bf16 mismatch"

    # Config 2: C=768 -> multiple lane-aligned channel tiles, plus H tiling.
    B2, C2, H2, W2 = 1, 768, 8, 8
    k2x, k2w, k2b = jax.random.split(jax.random.PRNGKey(1), 3)
    x2 = jax.random.normal(k2x, (B2, H2 * W2, C2), dtype=jnp.float32)
    w2 = jax.random.normal(k2w, (3, 3, C2), dtype=jnp.float32) * 0.1
    b2 = jax.random.normal(k2b, (C2,), dtype=jnp.float32) * 0.1
    out2 = jax.block_until_ready(dwconv(x2, w2, b2, H=H2, W=W2, max_rows=4))
    assert jnp.allclose(out2, _reference(x2, w2, b2, H2, W2),
                        atol=1e-5, rtol=1e-5), "C-tiled mismatch"

    print("KERNEL_OK")
</pallas_src>

<mosaic_0001>
module attributes {stable_mosaic.version = 11 : i64} {
  func.func @probe(%arg0: memref<8x128xf32, #tpu.memory_space<vmem>>, %arg1: memref<8x128xf32, #tpu.memory_space<vmem>>) attributes {dimension_semantics = [], scalar_prefetch = 0 : i64, scratch_operands = 0 : i64, tpu.core_type = #tpu.core_type<tc>} {
    %c0 = arith.constant 0 : index
    %c0_0 = arith.constant 0 : index
    %0 = vector.load %arg0[%c0, %c0_0] : memref<8x128xf32, #tpu.memory_space<vmem>>, vector<8x128xf32>
    %c1_i32 = arith.constant 1 : i32
    %1 = tpu.dynamic_rotate %0 by %c1_i32 dim 0 : vector<8x128xf32>, i32 -> vector<8x128xf32>
    %c0_1 = arith.constant 0 : index
    %c0_2 = arith.constant 0 : index
    %2 = vector.load %arg1[%c0_1, %c0_2] : memref<8x128xf32, #tpu.memory_space<vmem>>, vector<8x128xf32>
    tpu.vector_store %arg1[%c0_1, %c0_2], %1 {strides = array<i32>} : memref<8x128xf32, #tpu.memory_space<vmem>>, vector<8x128xf32>,
    return
  }
}

module attributes {stable_mosaic.version = 11 : i64} {
  func.func @dwconv_kernel(%arg0: i32, %arg1: i32, %arg2: i32, %arg3: memref<1x16x16x128xf32, #tpu.memory_space<vmem>>, %arg4: memref<1x1x16x128xf32, #tpu.memory_space<vmem>>, %arg5: memref<1x1x16x128xf32, #tpu.memory_space<vmem>>, %arg6: memref<9x128xf32, #tpu.memory_space<vmem>>, %arg7: memref<1x128xf32, #tpu.memory_space<vmem>>, %arg8: memref<1x16x16x128xf32, #tpu.memory_space<vmem>>) attributes {dimension_semantics = [#tpu.dimension_semantics<parallel>, #tpu.dimension_semantics<parallel>, #tpu.dimension_semantics<parallel>], iteration_bounds = array<i64: 2, 1, 1>, scalar_prefetch = 0 : i64, scratch_operands = 0 : i64, tpu.core_type = #tpu.core_type<tc>, window_params = [{transform_indices = @transform_0, window_bounds = array<i64: 1, 16, 16, 128>}, {transform_indices = @transform_1, window_bounds = array<i64: 1, 1, 16, 128>}, {transform_indices = @transform_2, window_bounds = array<i64: 1, 1, 16, 128>}, {transform_indices = @transform_3, window_bounds = array<i64: 9, 128>}, {transform_indices = @transform_4, window_bounds = array<i64: 1, 128>}, {transform_indices = @transform_5, window_bounds = array<i64: 1, 16, 16, 128>}]} {
    %c0 = arith.constant 0 : index
    %c0_0 = arith.constant 0 : index
    %0 = vector.load %arg6[%c0, %c0_0] : memref<9x128xf32, #tpu.memory_space<vmem>>, vector<9x128xf32>
    %1 = vector.extract_strided_slice %0 {offsets = [0, 0], sizes = [1, 128], strides = [1, 1]} : vector<9x128xf32> to vector<1x128xf32>
    %2 = vector.extract_strided_slice %0 {offsets = [1, 0], sizes = [1, 128], strides = [1, 1]} : vector<9x128xf32> to vector<1x128xf32>
    %3 = vector.extract_strided_slice %0 {offsets = [2, 0], sizes = [1, 128], strides = [1, 1]} : vector<9x128xf32> to vector<1x128xf32>
    %4 = vector.extract_strided_slice %0 {offsets = [3, 0], sizes = [1, 128], strides = [1, 1]} : vector<9x128xf32> to vector<1x128xf32>
    %5 = vector.extract_strided_slice %0 {offsets = [4, 0], sizes = [1, 128], strides = [1, 1]} : vector<9x128xf32> to vector<1x128xf32>
    %6 = vector.extract_strided_slice %0 {offsets = [5, 0], sizes = [1, 128], strides = [1, 1]} : vector<9x128xf32> to vector<1x128xf32>
    %7 = vector.extract_strided_slice %0 {offsets = [6, 0], sizes = [1, 128], strides = [1, 1]} : vector<9x128xf32> to vector<1x128xf32>
    %8 = vector.extract_strided_slice %0 {offsets = [7, 0], sizes = [1, 128], strides = [1, 1]} : vector<9x128xf32> to vector<1x128xf32>
    %9 = vector.extract_strided_slice %0 {offsets = [8, 0], sizes = [1, 128], strides = [1, 1]} : vector<9x128xf32> to vector<1x128xf32>
    %c0_1 = arith.constant 0 : index
    %c0_2 = arith.constant 0 : index
    %10 = vector.load %arg7[%c0_1, %c0_2] : memref<1x128xf32, #tpu.memory_space<vmem>>, vector<1x128xf32>
    %11 = tpu.iota {dimensions = array<i32: 0>} : vector<16x1xi32>
    %c0_i32 = arith.constant 0 : i32
    %12 = vector.broadcast %c0_i32 : i32 to vector<16x1xi32>
    %13 = arith.cmpi sgt, %11, %12 : vector<16x1xi32>
    %14 = arith.extui %13 : vector<16x1xi1> to vector<16x1xi32>
    %15 = arith.sitofp %14 : vector<16x1xi32> to vector<16x1xf32>
    %c15_i32 = arith.constant 15 : i32
    %16 = vector.broadcast %c15_i32 : i32 to vector<16x1xi32>
    %17 = arith.cmpi slt, %11, %16 : vector<16x1xi32>
    %18 = arith.extui %17 : vector<16x1xi1> to vector<16x1xi32>
    %19 = arith.sitofp %18 : vector<16x1xi32> to vector<16x1xf32>
    %c0_3 = arith.constant 0 : index
    %c0_4 = arith.constant 0 : index
    %c0_5 = arith.constant 0 : index
    %c0_6 = arith.constant 0 : index
    %20 = vector.load %arg4[%c0_3, %c0_4, %c0_5, %c0_6] : memref<1x1x16x128xf32, #tpu.memory_space<vmem>>, vector<1x1x16x128xf32>
    %21 = vector.shape_cast %20 : vector<1x1x16x128xf32> to vector<1x16x128xf32>
    %c0_i32_7 = arith.constant 0 : i32
    %22 = arith.cmpi sgt, %arg2, %c0_i32_7 : i32
    %23 = arith.extui %22 : i1 to i32
    %24 = arith.sitofp %23 : i32 to f32
    %25 = vector.broadcast %24 : f32 to vector<1x16x128xf32>
    %26 = arith.mulf %21, %25 : vector<1x16x128xf32>
    %c0_8 = arith.constant 0 : index
    %c0_9 = arith.constant 0 : index
    %c0_10 = arith.constant 0 : index
    %c0_11 = arith.constant 0 : index
    %27 = vector.load %arg5[%c0_8, %c0_9, %c0_10, %c0_11] : memref<1x1x16x128xf32, #tpu.memory_space<vmem>>, vector<1x1x16x128xf32>
    %28 = vector.shape_cast %27 : vector<1x1x16x128xf32> to vector<1x16x128xf32>
    %c0_i32_12 = arith.constant 0 : i32
    %29 = arith.cmpi slt, %arg2, %c0_i32_12 : i32
    %30 = arith.extui %29 : i1 to i32
    %31 = arith.sitofp %30 : i32 to f32
    %32 = vector.broadcast %31 : f32 to vector<1x16x128xf32>
    %33 = arith.mulf %28, %32 : vector<1x16x128xf32>
    %c0_13 = arith.constant 0 : index
    %c0_14 = arith.constant 0 : index
    %c0_15 = arith.constant 0 : index
    %c0_16 = arith.constant 0 : index
    %34 = vector.load %arg3[%c0_13, %c0_14, %c0_15, %c0_16] : memref<1x16x16x128xf32, #tpu.memory_space<vmem>>, vector<1x1x16x128xf32>
    %35 = vector.shape_cast %34 : vector<1x1x16x128xf32> to vector<1x16x128xf32>
    %c0_17 = arith.constant 0 : index
    %c1 = arith.constant 1 : index
    %c0_18 = arith.constant 0 : index
    %c0_19 = arith.constant 0 : index
    %36 = vector.load %arg3[%c0_17, %c1, %c0_18, %c0_19] : memref<1x16x16x128xf32, #tpu.memory_space<vmem>>, vector<1x1x16x128xf32>
    %37 = vector.shape_cast %36 : vector<1x1x16x128xf32> to vector<1x16x128xf32>
    %38 = vector.shape_cast %2 : vector<1x128xf32> to vector<1x1x128xf32>
    %39 = vector.broadcast %38 : vector<1x1x128xf32> to vector<1x16x128xf32>
    %40 = arith.mulf %26, %39 : vector<1x16x128xf32>
    %41 = vector.shape_cast %5 : vector<1x128xf32> to vector<1x1x128xf32>
    %42 = vector.broadcast %41 : vector<1x1x128xf32> to vector<1x16x128xf32>
    %43 = arith.mulf %35, %42 : vector<1x16x128xf32>
    %44 = arith.addf %40, %43 : vector<1x16x128xf32>
    %45 = vector.shape_cast %8 : vector<1x128xf32> to vector<1x1x128xf32>
    %46 = vector.broadcast %45 : vector<1x1x128xf32> to vector<1x16x128xf32>
    %47 = arith.mulf %37, %46 : vector<1x16x128xf32>
    %48 = arith.addf %44, %47 : vector<1x16x128xf32>
    %49 = vector.shape_cast %10 : vector<1x128xf32> to vector<1x1x128xf32>
    %50 = vector.broadcast %49 : vector<1x1x128xf32> to vector<1x16x128xf32>
    %51 = arith.addf %48, %50 : vector<1x16x128xf32>
    %52 = vector.shape_cast %1 : vector<1x128xf32> to vector<1x1x128xf32>
    %53 = vector.broadcast %52 : vector<1x1x128xf32> to vector<1x16x128xf32>
    %54 = arith.mulf %26, %53 : vector<1x16x128xf32>
    %55 = vector.shape_cast %4 : vector<1x128xf32> to vector<1x1x128xf32>
    %56 = vector.broadcast %55 : vector<1x1x128xf32> to vector<1x16x128xf32>
    %57 = arith.mulf %35, %56 : vector<1x16x128xf32>
    %58 = arith.addf %54, %57 : vector<1x16x128xf32>
    %59 = vector.shape_cast %7 : vector<1x128xf32> to vector<1x1x128xf32>
    %60 = vector.broadcast %59 : vector<1x1x128xf32> to vector<1x16x128xf32>
    %61 = arith.mulf %37, %60 : vector<1x16x128xf32>
    %62 = arith.addf %58, %61 : vector<1x16x128xf32>
    %63 = vector.shape_cast %3 : vector<1x128xf32> to vector<1x1x128xf32>
    %64 = vector.broadcast %63 : vector<1x1x128xf32> to vector<1x16x128xf32>
    %65 = arith.mulf %26, %64 : vector<1x16x128xf32>
    %66 = vector.shape_cast %6 : vector<1x128xf32> to vector<1x1x128xf32>
    %67 = vector.broadcast %66 : vector<1x1x128xf32> to vector<1x16x128xf32>
    %68 = arith.mulf %35, %67 : vector<1x16x128xf32>
    %69 = arith.addf %65, %68 : vector<1x16x128xf32>
    %70 = vector.shape_cast %9 : vector<1x128xf32> to vector<1x1x128xf32>
    %71 = vector.broadcast %70 : vector<1x1x128xf32> to vector<1x16x128xf32>
    %72 = arith.mulf %37, %71 : vector<1x16x128xf32>
    %73 = arith.addf %69, %72 : vector<1x16x128xf32>
    %c1_i32 = arith.constant 1 : i32
    %74 = tpu.dynamic_rotate %62 by %c1_i32 dim 1 : vector<1x16x128xf32>, i32 -> vector<1x16x128xf32>
    %75 = vector.shape_cast %15 : vector<16x1xf32> to vector<1x16x1xf32>
    %76 = vector.broadcast %75 : vector<1x16x1xf32> to vector<1x16x128xf32>
    %77 = arith.mulf %74, %76 : vector<1x16x128xf32>
    %78 = arith.addf %51, %77 : vector<1x16x128xf32>
    %c15_i32_20 = arith.constant 15 : i32
    %79 = tpu.dynamic_rotate %73 by %c15_i32_20 dim 1 : vector<1x16x128xf32>, i32 -> vector<1x16x128xf32>
    %80 = vector.shape_cast %19 : vector<16x1xf32> to vector<1x16x1xf32>
    %81 = vector.broadcast %80 : vector<1x16x1xf32> to vector<1x16x128xf32>
    %82 = arith.mulf %79, %81 : vector<1x16x128xf32>
    %83 = arith.addf %78, %82 : vector<1x16x128xf32>
    %c0_21 = arith.constant 0 : index
    %c0_22 = arith.constant 0 : index
    %c0_23 = arith.constant 0 : index
    %c0_24 = arith.constant 0 : index
    %84 = vector.load %arg8[%c0_21, %c0_22, %c0_23, %c0_24] : memref<1x16x16x128xf32, #tpu.memory_space<vmem>>, vector<1x1x16x128xf32>
    %85 = vector.shape_cast %84 : vector<1x1x16x128xf32> to vector<1x16x128xf32>
    %86 = vector.shape_cast %83 : vector<1x16x128xf32> to vector<1x1x16x128xf32>
    tpu.vector_store %arg8[%c0_21, %c0_22, %c0_23, %c0_24], %86 {strides = array<i32>} : memref<1x16x16x128xf32, #tpu.memory_space<vmem>>, vector<1x1x16x128xf32>,
    %c1_i32_25 = arith.constant 1 : i32
    %c14_i32 = arith.constant 14 : i32
    %87 = arith.addi %c1_i32_25, %c14_i32 : i32
    %c1_i32_26 = arith.constant 1 : i32
    scf.for %arg9 = %c1_i32_25 to %87 step %c1_i32_26  : i32 {
      %c1_i32_40 = arith.constant 1 : i32
      %141 = arith.subi %arg9, %c1_i32_40 : i32
      %c0_41 = arith.constant 0 : index
      %142 = arith.index_cast %141 : i32 to index
      %c0_42 = arith.constant 0 : index
      %c0_43 = arith.constant 0 : index
      %143 = vector.load %arg3[%c0_41, %142, %c0_42, %c0_43] : memref<1x16x16x128xf32, #tpu.memory_space<vmem>>, vector<1x1x16x128xf32>
      %144 = vector.shape_cast %143 : vector<1x1x16x128xf32> to vector<1x16x128xf32>
      %c0_44 = arith.constant 0 : index
      %145 = arith.index_cast %arg9 : i32 to index
      %c0_45 = arith.constant 0 : index
      %c0_46 = arith.constant 0 : index
      %146 = vector.load %arg3[%c0_44, %145, %c0_45, %c0_46] : memref<1x16x16x128xf32, #tpu.memory_space<vmem>>, vector<1x1x16x128xf32>
      %147 = vector.shape_cast %146 : vector<1x1x16x128xf32> to vector<1x16x128xf32>
      %c1_i32_47 = arith.constant 1 : i32
      %148 = arith.addi %arg9, %c1_i32_47 : i32
      %c0_48 = arith.constant 0 : index
      %149 = arith.index_cast %148 : i32 to index
      %c0_49 = arith.constant 0 : index
      %c0_50 = arith.constant 0 : index
      %150 = vector.load %arg3[%c0_48, %149, %c0_49, %c0_50] : memref<1x16x16x128xf32, #tpu.memory_space<vmem>>, vector<1x1x16x128xf32>
      %151 = vector.shape_cast %150 : vector<1x1x16x128xf32> to vector<1x16x128xf32>
      %152 = vector.shape_cast %2 : vector<1x128xf32> to vector<1x1x128xf32>
      %153 = vector.broadcast %152 : vector<1x1x128xf32> to vector<1x16x128xf32>
      %154 = arith.mulf %144, %153 : vector<1x16x128xf32>
      %155 = vector.shape_cast %5 : vector<1x128xf32> to vector<1x1x128xf32>
      %156 = vector.broadcast %155 : vector<1x1x128xf32> to vector<1x16x128xf32>
      %157 = arith.mulf %147, %156 : vector<1x16x128xf32>
      %158 = arith.addf %154, %157 : vector<1x16x128xf32>
      %159 = vector.shape_cast %8 : vector<1x128xf32> to vector<1x1x128xf32>
      %160 = vector.broadcast %159 : vector<1x1x128xf32> to vector<1x16x128xf32>
      %161 = arith.mulf %151, %160 : vector<1x16x128xf32>
      %162 = arith.addf %158, %161 : vector<1x16x128xf32>
      %163 = vector.shape_cast %10 : vector<1x128xf32> to vector<1x1x128xf32>
      %164 = vector.broadcast %163 : vector<1x1x128xf32> to vector<1x16x128xf32>
      %165 = arith.addf %162, %164 : vector<1x16x128xf32>
      %166 = vector.shape_cast %1 : vector<1x128xf32> to vector<1x1x128xf32>
      %167 = vector.broadcast %166 : vector<1x1x128xf32> to vector<1x16x128xf32>
      %168 = arith.mulf %144, %167 : vector<1x16x128xf32>
      %169 = vector.shape_cast %4 : vector<1x128xf32> to vector<1x1x128xf32>
      %170 = vector.broadcast %169 : vector<1x1x128xf32> to vector<1x16x128xf32>
      %171 = arith.mulf %147, %170 : vector<1x16x128xf32>
      %172 = arith.addf %168, %171 : vector<1x16x128xf32>
      %173 = vector.shape_cast %7 : vector<1x128xf32> to vector<1x1x128xf32>
      %174 = vector.broadcast %173 : vector<1x1x128xf32> to vector<1x16x128xf32>
      %175 = arith.mulf %151, %174 : vector<1x16x128xf32>
      %176 = arith.addf %172, %175 : vector<1x16x128xf32>
      %177 = vector.shape_cast %3 : vector<1x128xf32> to vector<1x1x128xf32>
      %178 = vector.broadcast %177 : vector<1x1x128xf32> to vector<1x16x128xf32>
      %179 = arith.mulf %144, %178 : vector<1x16x128xf32>
      %180 = vector.shape_cast %6 : vector<1x128xf32> to vector<1x1x128xf32>
      %181 = vector.broadcast %180 : vector<1x1x128xf32> to vector<1x16x128xf32>
      %182 = arith.mulf %147, %181 : vector<1x16x128xf32>
      %183 = arith.addf %179, %182 : vector<1x16x128xf32>
      %184 = vector.shape_cast %9 : vector<1x128xf32> to vector<1x1x128xf32>
      %185 = vector.broadcast %184 : vector<1x1x128xf32> to vector<1x16x128xf32>
      %186 = arith.mulf %151, %185 : vector<1x16x128xf32>
      %187 = arith.addf %183, %186 : vector<1x16x128xf32>
      %c1_i32_51 = arith.constant 1 : i32
      %188 = tpu.dynamic_rotate %176 by %c1_i32_51 dim 1 : vector<1x16x128xf32>, i32 -> vector<1x16x128xf32>
      %189 = vector.shape_cast %15 : vector<16x1xf32> to vector<1x16x1xf32>
      %190 = vector.broadcast %189 : vector<1x16x1xf32> to vector<1x16x128xf32>
      %191 = arith.mulf %188, %190 : vector<1x16x128xf32>
      %192 = arith.addf %165, %191 : vector<1x16x128xf32>
      %c15_i32_52 = arith.constant 15 : i32
      %193 = tpu.dynamic_rotate %187 by %c15_i32_52 dim 1 : vector<1x16x128xf32>, i32 -> vector<1x16x128xf32>
      %194 = vector.shape_cast %19 : vector<16x1xf32> to vector<1x16x1xf32>
      %195 = vector.broadcast %194 : vector<1x16x1xf32> to vector<1x16x128xf32>
      %196 = arith.mulf %193, %195 : vector<1x16x128xf32>
      %197 = arith.addf %192, %196 : vector<1x16x128xf32>
      %c0_53 = arith.constant 0 : index
      %198 = arith.index_cast %arg9 : i32 to index
      %c0_54 = arith.constant 0 : index
      %c0_55 = arith.constant 0 : index
      %199 = vector.load %arg8[%c0_53, %198, %c0_54, %c0_55] : memref<1x16x16x128xf32, #tpu.memory_space<vmem>>, vector<1x1x16x128xf32>
      %200 = vector.shape_cast %199 : vector<1x1x16x128xf32> to vector<1x16x128xf32>
      %201 = vector.shape_cast %197 : vector<1x16x128xf32> to vector<1x1x16x128xf32>
      tpu.vector_store %arg8[%c0_53, %198, %c0_54, %c0_55], %201 {strides = array<i32>} : memref<1x16x16x128xf32, #tpu.memory_space<vmem>>, vector<1x1x16x128xf32>,
    }
    %c14_i32_27 = arith.constant 14 : i32
    %c0_28 = arith.constant 0 : index
    %c14 = arith.constant 14 : index
    %c0_29 = arith.constant 0 : index
    %c0_30 = arith.constant 0 : index
    %88 = vector.load %arg3[%c0_28, %c14, %c0_29, %c0_30] : memref<1x16x16x128xf32, #tpu.memory_space<vmem>>, vector<1x1x16x128xf32>
    %89 = vector.shape_cast %88 : vector<1x1x16x128xf32> to vector<1x16x128xf32>
    %c0_31 = arith.constant 0 : index
    %c15 = arith.constant 15 : index
    %c0_32 = arith.constant 0 : index
    %c0_33 = arith.constant 0 : index
    %90 = vector.load %arg3[%c0_31, %c15, %c0_32, %c0_33] : memref<1x16x16x128xf32, #tpu.memory_space<vmem>>, vector<1x1x16x128xf32>
    %91 = vector.shape_cast %90 : vector<1x1x16x128xf32> to vector<1x16x128xf32>
    %92 = vector.shape_cast %2 : vector<1x128xf32> to vector<1x1x128xf32>
    %93 = vector.broadcast %92 : vector<1x1x128xf32> to vector<1x16x128xf32>
    %94 = arith.mulf %89, %93 : vector<1x16x128xf32>
    %95 = vector.shape_cast %5 : vector<1x128xf32> to vector<1x1x128xf32>
    %96 = vector.broadcast %95 : vector<1x1x128xf32> to vector<1x16x128xf32>
    %97 = arith.mulf %91, %96 : vector<1x16x128xf32>
    %98 = arith.addf %94, %97 : vector<1x16x128xf32>
    %99 = vector.shape_cast %8 : vector<1x128xf32> to vector<1x1x128xf32>
    %100 = vector.broadcast %99 : vector<1x1x128xf32> to vector<1x16x128xf32>
    %101 = arith.mulf %33, %100 : vector<1x16x128xf32>
    %102 = arith.addf %98, %101 : vector<1x16x128xf32>
    %103 = vector.shape_cast %10 : vector<1x128xf32> to vector<1x1x128xf32>
    %104 = vector.broadcast %103 : vector<1x1x128xf32> to vector<1x16x128xf32>
    %105 = arith.addf %102, %104 : vector<1x16x128xf32>
    %106 = vector.shape_cast %1 : vector<1x128xf32> to vector<1x1x128xf32>
    %107 = vector.broadcast %106 : vector<1x1x128xf32> to vector<1x16x128xf32>
    %108 = arith.mulf %89, %107 : vector<1x16x128xf32>
    %109 = vector.shape_cast %4 : vector<1x128xf32> to vector<1x1x128xf32>
    %110 = vector.broadcast %109 : vector<1x1x128xf32> to vector<1x16x128xf32>
    %111 = arith.mulf %91, %110 : vector<1x16x128xf32>
    %112 = arith.addf %108, %111 : vector<1x16x128xf32>
    %113 = vector.shape_cast %7 : vector<1x128xf32> to vector<1x1x128xf32>
    %114 = vector.broadcast %113 : vector<1x1x128xf32> to vector<1x16x128xf32>
    %115 = arith.mulf %33, %114 : vector<1x16x128xf32>
    %116 = arith.addf %112, %115 : vector<1x16x128xf32>
    %117 = vector.shape_cast %3 : vector<1x128xf32> to vector<1x1x128xf32>
    %118 = vector.broadcast %117 : vector<1x1x128xf32> to vector<1x16x128xf32>
    %119 = arith.mulf %89, %118 : vector<1x16x128xf32>
    %120 = vector.shape_cast %6 : vector<1x128xf32> to vector<1x1x128xf32>
    %121 = vector.broadcast %120 : vector<1x1x128xf32> to vector<1x16x128xf32>
    %122 = arith.mulf %91, %121 : vector<1x16x128xf32>
    %123 = arith.addf %119, %122 : vector<1x16x128xf32>
    %124 = vector.shape_cast %9 : vector<1x128xf32> to vector<1x1x128xf32>
    %125 = vector.broadcast %124 : vector<1x1x128xf32> to vector<1x16x128xf32>
    %126 = arith.mulf %33, %125 : vector<1x16x128xf32>
    %127 = arith.addf %123, %126 : vector<1x16x128xf32>
    %c1_i32_34 = arith.constant 1 : i32
    %128 = tpu.dynamic_rotate %116 by %c1_i32_34 dim 1 : vector<1x16x128xf32>, i32 -> vector<1x16x128xf32>
    %129 = vector.shape_cast %15 : vector<16x1xf32> to vector<1x16x1xf32>
    %130 = vector.broadcast %129 : vector<1x16x1xf32> to vector<1x16x128xf32>
    %131 = arith.mulf %128, %130 : vector<1x16x128xf32>
    %132 = arith.addf %105, %131 : vector<1x16x128xf32>
    %c15_i32_35 = arith.constant 15 : i32
    %133 = tpu.dynamic_rotate %127 by %c15_i32_35 dim 1 : vector<1x16x128xf32>, i32 -> vector<1x16x128xf32>
    %134 = vector.shape_cast %19 : vector<16x1xf32> to vector<1x16x1xf32>
    %135 = vector.broadcast %134 : vector<1x16x1xf32> to vector<1x16x128xf32>
    %136 = arith.mulf %133, %135 : vector<1x16x128xf32>
    %137 = arith.addf %132, %136 : vector<1x16x128xf32>
    %c0_36 = arith.constant 0 : index
    %c15_37 = arith.constant 15 : index
    %c0_38 = arith.constant 0 : index
    %c0_39 = arith.constant 0 : index
    %138 = vector.load %arg8[%c0_36, %c15_37, %c0_38, %c0_39] : memref<1x16x16x128xf32, #tpu.memory_space<vmem>>, vector<1x1x16x128xf32>
    %139 = vector.shape_cast %138 : vector<1x1x16x128xf32> to vector<1x16x128xf32>
    %140 = vector.shape_cast %137 : vector<1x16x128xf32> to vector<1x1x16x128xf32>
    tpu.vector_store %arg8[%c0_36, %c15_37, %c0_38, %c0_39], %140 {strides = array<i32>} : memref<1x16x16x128xf32, #tpu.memory_space<vmem>>, vector<1x1x16x128xf32>,
    return
  }
  func.func @transform_0(%arg0: i32, %arg1: i32, %arg2: i32) -> (i32, i32, i32, i32) {
    %c0_i32 = arith.constant 0 : i32
    %c0_i32_0 = arith.constant 0 : i32
    return %arg0, %arg2, %c0_i32, %arg1 : i32, i32, i32, i32
  }
  func.func @transform_1(%arg0: i32, %arg1: i32, %arg2: i32) -> (i32, i32, i32, i32) {
    %c16_i32 = arith.constant 16 : i32
    %0 = arith.muli %arg2, %c16_i32 : i32
    %c1_i32 = arith.constant 1 : i32
    %1 = arith.subi %0, %c1_i32 : i32
    %c0_i32 = arith.constant 0 : i32
    %2 = arith.maxsi %1, %c0_i32 : i32
    %c0_i32_0 = arith.constant 0 : i32
    %c0_i32_1 = arith.constant 0 : i32
    return %arg0, %2, %c0_i32_0, %arg1 : i32, i32, i32, i32
  }
  func.func @transform_2(%arg0: i32, %arg1: i32, %arg2: i32) -> (i32, i32, i32, i32) {
    %c16_i32 = arith.constant 16 : i32
    %0 = arith.muli %arg2, %c16_i32 : i32
    %c16_i32_0 = arith.constant 16 : i32
    %1 = arith.addi %0, %c16_i32_0 : i32
    %c15_i32 = arith.constant 15 : i32
    %2 = arith.minsi %1, %c15_i32 : i32
    %c0_i32 = arith.constant 0 : i32
    %c0_i32_1 = arith.constant 0 : i32
    return %arg0, %2, %c0_i32, %arg1 : i32, i32, i32, i32
  }
  func.func @transform_3(%arg0: i32, %arg1: i32, %arg2: i32) -> (i32, i32) {
    %c0_i32 = arith.constant 0 : i32
    %c0_i32_0 = arith.constant 0 : i32
    return %c0_i32, %arg1 : i32, i32
  }
  func.func @transform_4(%arg0: i32, %arg1: i32, %arg2: i32) -> (i32, i32) {
    %c0_i32 = arith.constant 0 : i32
    %c0_i32_0 = arith.constant 0 : i32
    return %c0_i32, %arg1 : i32, i32
  }
  func.func @transform_5(%arg0: i32, %arg1: i32, %arg2: i32) -> (i32, i32, i32, i32) {
    %c0_i32 = arith.constant 0 : i32
    %c0_i32_0 = arith.constant 0 : i32
    return %arg0, %arg2, %c0_i32, %arg1 : i32, i32, i32, i32
  }
}

</mosaic_0001>

<llo_original>
// kernel: tpu_custom_call.1
$region0: #{tpu_custom_call.1}
  #allocation0 [shape = 'u32[]', space=smem, size = 0x4, offset = 0x4, fixed_abs, tag = 'smem constant byte address 0x4 - core index']
  #allocation1 [shape = 'u32[144,128]{1,0:T(1,128)}', space=vmem, size = 0x12000, scoped, tag = 'internal scratch']
  %s0 = inlined_call_operand.hbm [shape: f32[8,128], index: 0, kind: input, shape index: {}]
  %s1 = inlined_call_operand.hbm [shape: f32[8,128], index: 1, kind: output, shape index: {}]
  %s2 = sld [smem:[#allocation0]]
  $region18: #{tpu_custom_call.1} parent=0
    _
  %s4 = ssub.s32 1, %s2
  %s5 = scalar_select 0, %s4, %s2
  $region1: #{tpu_custom_call.1} parent=0
    #allocation2 [shape = 'u8[4096]{0}', space=vmem, size = 0x1000, scoped, tag = 'input window, operand 0, single buffered']
    #allocation3 [shape = 's32[1]{0}', space=sflag, size = 0x4, scoped, tag = 'scoped memory for tpu_custom_call.1']
    #allocation4 [shape = 's32[1]{0}', space=sflag, size = 0x4, scoped, tag = 'scoped memory for tpu_custom_call.1']
    #allocation5 [shape = 'u8[4096]{0}', space=vmem, size = 0x1000, scoped, tag = 'output window, operand 0, single buffered']
    %6 = vsyncpa [#allocation3], 0
    %7 = vsyncpa [#allocation4], 0
    // Predicated region
    $region2: #{tpu_custom_call.1} parent=1 // pred_check
      _
    $region3: #{tpu_custom_call.1} parent=1 // pred_check_branch
      %9 = sbr.rel (0) target = $region5
    $region4: #{tpu_custom_call.1} parent=1 // pred_region
      %s11 = ssub.s32 128, 128
      %12 = vsyncadd [#allocation3], %s11
      %s14 = sshll.u32 [#allocation2], 4
      %s15 = int_to_ptr.vmem [resolvable:$true] %s14
      %17 = dma.hbm_to_vmem [thread:$0]  %s0, 128, %s15, [#allocation3]
    $region5: #{tpu_custom_call.1} parent=1 // pred_fallthru
      _
    // Predicated region
    $region6: #{tpu_custom_call.1} parent=1 // pred_check
      _
    $region7: #{tpu_custom_call.1} parent=1 // pred_check_branch
      %19 = sbr.rel (0) target = $region9
    $region8: #{tpu_custom_call.1} parent=1 // pred_region
      %20 = dma.done [#allocation3], 128
    $region9: #{tpu_custom_call.1} parent=1 // pred_fallthru
      _
    %v21 = vld [vmem:[#allocation2] sm:$0xff]
    %v22 = vrot.slane %v21, 7
    %23 = vst [vmem:[#allocation5] sm:$0xff] %v22
    // Predicated region
    $region10: #{tpu_custom_call.1} parent=1 // pred_check
      _
    $region11: #{tpu_custom_call.1} parent=1 // pred_check_branch
      %25 = sbr.rel (0) target = $region13
    $region12: #{tpu_custom_call.1} parent=1 // pred_region
      %s27 = ssub.s32 128, 128
      %28 = vsyncadd [#allocation4], %s27
      %s30 = sshll.u32 [#allocation5], 4
      %s31 = int_to_ptr.vmem [resolvable:$true] %s30
      %33 = dma.vmem_to_hbm [thread:$0]  %s31, 128, %s1, [#allocation4]
    $region13: #{tpu_custom_call.1} parent=1 // pred_fallthru
      _
    // Predicated region
    $region14: #{tpu_custom_call.1} parent=1 // pred_check
      _
    $region15: #{tpu_custom_call.1} parent=1 // pred_check_branch
      %35 = sbr.rel (0) target = $region17
    $region16: #{tpu_custom_call.1} parent=1 // pred_region
      %36 = dma.done [#allocation4], 128
    $region17: #{tpu_custom_call.1} parent=1 // pred_fallthru
      _
    %37 = vsyncpa [#allocation3], 1
    %38 = vsyncpa [#allocation4], 1

// kernel: _dwconv_impl.1
$region0: #{_dwconv_impl.1}
  #allocation0 [shape = 'u32[]', space=smem, size = 0x4, offset = 0x4, fixed_abs, tag = 'smem constant byte address 0x4 - core index']
  #allocation1 [shape = 'u32[144,128]{1,0:T(1,128)}', space=vmem, size = 0x12000, scoped, tag = 'internal scratch']
  %s0 = inlined_call_operand.vmem [shape: f32[2,16,16,128], index: 0, kind: input, shape index: {}, may-alias: {0,1,2}]
  %s1 = inlined_call_operand.vmem [shape: f32[2,16,16,128], index: 1, kind: input, shape index: {}, may-alias: {0,1,2}]
  %s2 = inlined_call_operand.vmem [shape: f32[2,16,16,128], index: 2, kind: input, shape index: {}, may-alias: {0,1,2}]
  %s3 = inlined_call_operand.vmem [shape: f32[9,128], index: 3, kind: input, shape index: {}]
  %s4 = inlined_call_operand.vmem [shape: f32[1,128], index: 4, kind: input, shape index: {}]
  %s5 = inlined_call_operand.vmem [shape: f32[2,16,16,128], index: 5, kind: output, shape index: {}]
  %s6 = sld [smem:[#allocation0]]
  $region60: #{_dwconv_impl.1} parent=0
    _
  %s8 = ssub.s32 1, %s6
  %s9 = scalar_select 0, %s8, %s6
  loop: start=0, step=1, limit=4
  $region2: #{_dwconv_impl.1} parent=0 // loop_pre_header
    _
  $region3: #{_dwconv_impl.1} parent=0 // loop_header
    %s11 = sphi 0, %s15
    %p12 = scmp.ge.s32.totalorder %s11, 4
    %s18 = sphi 0, %s37
    %s19 = sphi 0, %s33
    %s20 = sphi 0, %s29
    %s21 = sphi 0, %s18
    %s22 = sphi 0, %s19
    %s23 = sphi 0, %s20
    %s24 = sphi 0, %s21
    %s25 = sphi 0, %s22
    %s26 = sphi 0, %s23
    %s44 = sphi 0, %s46
    %s47 = sphi 0, %s44
    %s48 = sphi 0, %s47
    %s64 = sphi 0, %s48
    %s82 = sphi 0, %s84
    %s85 = sphi 0, %s82
    %s86 = sphi 0, %s85
    %s102 = sphi 0, %s86
    %s120 = sphi 0, %s122
    %s123 = sphi 0, %s120
    %s124 = sphi 0, %s123
    %s140 = sphi 0, %s124
    %s146 = sphi 0, %s148
    %s149 = sphi 0, %s146
    %s150 = sphi 0, %s149
    %s166 = sphi 0, %s150
    %s172 = sphi 0, %s174
    %s175 = sphi 0, %s172
    %s176 = sphi 0, %s175
    %s192 = sphi 0, %s176
    %s202 = sphi 0, %s204
    %s205 = sphi 0, %s202
    %s206 = sphi 0, %s205
    %s222 = sphi 0, %s206
  $region4: #{_dwconv_impl.1} parent=0 // loop_header_branch
    %14 = sbr.rel (%p12) target = $region8
  $region5: #{_dwconv_impl.1} parent=0 // loop_body
    %s16 = ssub.s32 %s11, 1
    %s17 = ssub.s32 %s11, 2
    %s27 = sadd.s32 1, %s20
    %p28 = scmp.ge.s32.totalorder %s27, 1
    %s29 = scalar_select %p28, 0, %s27
    %s30 = sadd.s32 1, %s19
    %s31 = scalar_select %p28, %s30, %s19
    %p32 = scmp.ge.s32.totalorder %s31, 1
    %s33 = scalar_select %p32, 0, %s31
    %s34 = sadd.s32 1, %s18
    %s35 = scalar_select %p32, %s34, %s18
    %p36 = scmp.ge.s32.totalorder %s35, 2
    %s37 = scalar_select %p36, 0, %s35
    %s38 = ssub.s32 %s18, %s37
    %s39 = ssub.s32 %s20, %s29
    %s40 = sor.u32 %s38, %s39
    %s41 = ssub.s32 %s19, %s33
    %s42 = sor.u32 %s40, %s41
    %p43 = scmp.eq.s32.totalorder %s42, 0
    %s45 = sadd.s32 %s44, 1
    %s46 = scalar_select %p43, %s44, %s45
    %p49 = pneg %p43
    %p50 = scmp.eq.s32.totalorder %s11, 1
    %p51 = por %p49, %p50
    %p52 = scmp.ne.s32.totalorder %s44, %s47
    %p53 = scmp.eq.s32.totalorder %s11, 0
    %p54 = por %p52, %p53
    %p55 = scmp.ne.s32.totalorder %s44, %s47
    %p56 = scmp.eq.s32.totalorder %s16, 1
    %p57 = por %p55, %p56
    %p58 = scmp.ne.s32.totalorder %s47, %s48
    %p59 = scmp.eq.s32.totalorder %s16, 0
    %p60 = por %p58, %p59
    %p61 = scmp.ne.s32.totalorder %s47, %s48
    %p62 = scmp.eq.s32.totalorder %s17, 1
    %p63 = por %p61, %p62
    %p65 = scmp.ne.s32.totalorder %s48, %s64
    %p66 = scmp.eq.s32.totalorder %s17, 0
    %p67 = por %p65, %p66
    %s68 = smul.u32 %s20, 16
    %s69 = ssub.s32 %s68, 1
    %p70 = scmp.gt.s32.totalorder %s69, 0
    %s71 = scalar_select %p70, %s69, 0
    %s72 = smul.u32 %s29, 16
    %s73 = ssub.s32 %s72, 1
    %p74 = scmp.gt.s32.totalorder %s73, 0
    %s75 = scalar_select %p74, %s73, 0
    %s76 = ssub.s32 %s18, %s37
    %s77 = ssub.s32 %s71, %s75
    %s78 = sor.u32 %s76, %s77
    %s79 = ssub.s32 %s19, %s33
    %s80 = sor.u32 %s78, %s79
    %p81 = scmp.eq.s32.totalorder %s80, 0
    %s83 = sadd.s32 %s82, 1
    %s84 = scalar_select %p81, %s82, %s83
    %p87 = pneg %p81
    %p88 = scmp.eq.s32.totalorder %s11, 1
    %p89 = por %p87, %p88
    %p90 = scmp.ne.s32.totalorder %s82, %s85
    %p91 = scmp.eq.s32.totalorder %s11, 0
    %p92 = por %p90, %p91
    %p93 = scmp.ne.s32.totalorder %s82, %s85
    %p94 = scmp.eq.s32.totalorder %s16, 1
    %p95 = por %p93, %p94
    %p96 = scmp.ne.s32.totalorder %s85, %s86
    %p97 = scmp.eq.s32.totalorder %s16, 0
    %p98 = por %p96, %p97
    %p99 = scmp.ne.s32.totalorder %s85, %s86
    %p100 = scmp.eq.s32.totalorder %s17, 1
    %p101 = por %p99, %p100
    %p103 = scmp.ne.s32.totalorder %s86, %s102
    %p104 = scmp.eq.s32.totalorder %s17, 0
    %p105 = por %p103, %p104
    %s106 = smul.u32 %s20, 16
    %s107 = sadd.s32 %s106, 16
    %p108 = scmp.lt.s32.totalorder %s107, 15
    %s109 = scalar_select %p108, %s107, 15
    %s110 = smul.u32 %s29, 16
    %s111 = sadd.s32 %s110, 16
    %p112 = scmp.lt.s32.totalorder %s111, 15
    %s113 = scalar_select %p112, %s111, 15
    %s114 = ssub.s32 %s18, %s37
    %s115 = ssub.s32 %s109, %s113
    %s116 = sor.u32 %s114, %s115
    %s117 = ssub.s32 %s19, %s33
    %s118 = sor.u32 %s116, %s117
    %p119 = scmp.eq.s32.totalorder %s118, 0
    %s121 = sadd.s32 %s120, 1
    %s122 = scalar_select %p119, %s120, %s121
    %p125 = pneg %p119
    %p126 = scmp.eq.s32.totalorder %s11, 1
    %p127 = por %p125, %p126
    %p128 = scmp.ne.s32.totalorder %s120, %s123
    %p129 = scmp.eq.s32.totalorder %s11, 0
    %p130 = por %p128, %p129
    %p131 = scmp.ne.s32.totalorder %s120, %s123
    %p132 = scmp.eq.s32.totalorder %s16, 1
    %p133 = por %p131, %p132
    %p134 = scmp.ne.s32.totalorder %s123, %s124
    %p135 = scmp.eq.s32.totalorder %s16, 0
    %p136 = por %p134, %p135
    %p137 = scmp.ne.s32.totalorder %s123, %s124
    %p138 = scmp.eq.s32.totalorder %s17, 1
    %p139 = por %p137, %p138
    %p141 = scmp.ne.s32.totalorder %s124, %s140
    %p142 = scmp.eq.s32.totalorder %s17, 0
    %p143 = por %p141, %p142
    %s144 = ssub.s32 %s19, %s33
    %p145 = scmp.eq.s32.totalorder %s144, 0
    %s147 = sadd.s32 %s146, 1
    %s148 = scalar_select %p145, %s146, %s147
    %p151 = pneg %p145
    %p152 = scmp.eq.s32.totalorder %s11, 1
    %p153 = por %p151, %p152
    %p154 = scmp.ne.s32.totalorder %s146, %s149
    %p155 = scmp.eq.s32.totalorder %s11, 0
    %p156 = por %p154, %p155
    %p157 = scmp.ne.s32.totalorder %s146, %s149
    %p158 = scmp.eq.s32.totalorder %s16, 1
    %p159 = por %p157, %p158
    %p160 = scmp.ne.s32.totalorder %s149, %s150
    %p161 = scmp.eq.s32.totalorder %s16, 0
    %p162 = por %p160, %p161
    %p163 = scmp.ne.s32.totalorder %s149, %s150
    %p164 = scmp.eq.s32.totalorder %s17, 1
    %p165 = por %p163, %p164
    %p167 = scmp.ne.s32.totalorder %s150, %s166
    %p168 = scmp.eq.s32.totalorder %s17, 0
    %p169 = por %p167, %p168
    %s170 = ssub.s32 %s19, %s33
    %p171 = scmp.eq.s32.totalorder %s170, 0
    %s173 = sadd.s32 %s172, 1
    %s174 = scalar_select %p171, %s172, %s173
    %p177 = pneg %p171
    %p178 = scmp.eq.s32.totalorder %s11, 1
    %p179 = por %p177, %p178
    %p180 = scmp.ne.s32.totalorder %s172, %s175
    %p181 = scmp.eq.s32.totalorder %s11, 0
    %p182 = por %p180, %p181
    %p183 = scmp.ne.s32.totalorder %s172, %s175
    %p184 = scmp.eq.s32.totalorder %s16, 1
    %p185 = por %p183, %p184
    %p186 = scmp.ne.s32.totalorder %s175, %s176
    %p187 = scmp.eq.s32.totalorder %s16, 0
    %p188 = por %p186, %p187
    %p189 = scmp.ne.s32.totalorder %s175, %s176
    %p190 = scmp.eq.s32.totalorder %s17, 1
    %p191 = por %p189, %p190
    %p193 = scmp.ne.s32.totalorder %s176, %s192
    %p194 = scmp.eq.s32.totalorder %s17, 0
    %p195 = por %p193, %p194
    %s196 = ssub.s32 %s18, %s37
    %s197 = ssub.s32 %s20, %s29
    %s198 = sor.u32 %s196, %s197
    %s199 = ssub.s32 %s19, %s33
    %s200 = sor.u32 %s198, %s199
    %p201 = scmp.eq.s32.totalorder %s200, 0
    %s203 = sadd.s32 %s202, 1
    %s204 = scalar_select %p201, %s202, %s203
    %p207 = pneg %p201
    %p208 = scmp.eq.s32.totalorder %s11, 1
    %p209 = por %p207, %p208
    %p210 = scmp.ne.s32.totalorder %s202, %s205
    %p211 = scmp.eq.s32.totalorder %s11, 0
    %p212 = por %p210, %p211
    %p213 = scmp.ne.s32.totalorder %s202, %s205
    %p214 = scmp.eq.s32.totalorder %s16, 1
    %p215 = por %p213, %p214
    %p216 = scmp.ne.s32.totalorder %s205, %s206
    %p217 = scmp.eq.s32.totalorder %s16, 0
    %p218 = por %p216, %p217
    %p219 = scmp.ne.s32.totalorder %s205, %s206
    %p220 = scmp.eq.s32.totalorder %s17, 1
    %p221 = por %p219, %p220
    %p223 = scmp.ne.s32.totalorder %s206, %s222
    %p224 = scmp.eq.s32.totalorder %s17, 0
    %p225 = por %p223, %p224
    %p226 = scmp.le.s32.totalorder 1, %s11
    %p227 = scmp.lt.s32.totalorder %s11, 3
    %p228 = pnand %p226, %p227
    %p229 = pneg %p228
    // Predicated region
    $region9: #{_dwconv_impl.1} parent=5 // pred_check
      _
    $region10: #{_dwconv_impl.1} parent=5 // pred_check_branch
      %231 = sbr.rel (%p228) target = $region12
    $region11: #{_dwconv_impl.1} parent=5 // pred_region
      %s232 = ssub.s32 %s11, 1
      // Predicated region
      $region13: #{_dwconv_impl.1} parent=11 // pred_check
        %p233 = pneg %p162
      $region14: #{_dwconv_impl.1} parent=11 // pred_check_branch
        %235 = sbr.rel (%p233) target = $region16
      $region15: #{_dwconv_impl.1} parent=11 // pred_region
        %p236 = scmp.lt.s32.totalorder %s22, 0
        %s237 = scalar_select %p236, %s22, 0
        %s238 = smul.addr %s237, 8
        %s239 = scalar_lea.vmem %s3, %s238
      $region16: #{_dwconv_impl.1} parent=11 // pred_fallthru
        _
      // Predicated region
      $region17: #{_dwconv_impl.1} parent=11 // pred_check
        %p240 = pneg %p188
      $region18: #{_dwconv_impl.1} parent=11 // pred_check_branch
        %242 = sbr.rel (%p240) target = $region20
      $region19: #{_dwconv_impl.1} parent=11 // pred_region
        %p243 = scmp.lt.s32.totalorder %s22, 0
        %s244 = scalar_select %p243, %s22, 0
        %s245 = scalar_lea.vmem %s4, %s244
      $region20: #{_dwconv_impl.1} parent=11 // pred_fallthru
        _
    $region12: #{_dwconv_impl.1} parent=5 // pred_fallthru
      _
    %p246 = scmp.lt.s32.totalorder %s11, 2
    // Predicated region
    $region21: #{_dwconv_impl.1} parent=5 // pred_check
      %p247 = pneg %p246
    $region22: #{_dwconv_impl.1} parent=5 // pred_check_branch
      %249 = sbr.rel (%p247) target = $region24
    $region23: #{_dwconv_impl.1} parent=5 // pred_region
      // Predicated region
      $region25: #{_dwconv_impl.1} parent=23 // pred_check
        %p250 = pneg %p54
      $region26: #{_dwconv_impl.1} parent=23 // pred_check_branch
        %252 = sbr.rel (%p250) target = $region28
      $region27: #{_dwconv_impl.1} parent=23 // pred_region
        %s253 = smul.u32 16, %s20
        %p254 = scmp.lt.s32.totalorder %s18, 1
        %s255 = scalar_select %p254, %s18, 1
        %p256 = scmp.lt.s32.totalorder %s253, 15
        %s257 = scalar_select %p256, %s253, 15
        %p258 = scmp.lt.s32.totalorder %s19, 0
        %s259 = scalar_select %p258, %s19, 0
        %s260 = smul.addr %s257, 2
        %s261 = sadd.s32 %s259, %s260
        %s262 = smul.addr %s255, 32
        %s263 = sadd.s32 %s261, %s262
        %s264 = smul.addr %s263, 8
        %s265 = scalar_lea.vmem %s0, %s264
        %s266 = smul.u32 16, %s20
      $region28: #{_dwconv_impl.1} parent=23 // pred_fallthru
        _
      // Predicated region
      $region29: #{_dwconv_impl.1} parent=23 // pred_check
        %p267 = pneg %p92
      $region30: #{_dwconv_impl.1} parent=23 // pred_check_branch
        %269 = sbr.rel (%p267) target = $region32
      $region31: #{_dwconv_impl.1} parent=23 // pred_region
        %s270 = smul.u32 %s20, 16
        %s271 = ssub.s32 %s270, 1
        %p272 = scmp.gt.s32.totalorder %s271, 0
        %s273 = scalar_select %p272, %s271, 0
        %p274 = scmp.lt.s32.totalorder %s18, 1
        %s275 = scalar_select %p274, %s18, 1
        %p276 = scmp.lt.s32.totalorder %s273, 15
        %s277 = scalar_select %p276, %s273, 15
        %p278 = scmp.lt.s32.totalorder %s19, 0
        %s279 = scalar_select %p278, %s19, 0
        %s280 = smul.addr %s277, 2
        %s281 = sadd.s32 %s279, %s280
        %s282 = smul.addr %s275, 32
        %s283 = sadd.s32 %s281, %s282
        %s284 = smul.addr %s283, 8
        %s285 = scalar_lea.vmem %s1, %s284
        %s286 = smul.u32 %s20, 16
        %s287 = ssub.s32 %s286, 1
        %p288 = scmp.gt.s32.totalorder %s287, 0
        %s289 = scalar_select %p288, %s287, 0
      $region32: #{_dwconv_impl.1} parent=23 // pred_fallthru
        _
      // Predicated region
      $region33: #{_dwconv_impl.1} parent=23 // pred_check
        %p290 = pneg %p130
      $region34: #{_dwconv_impl.1} parent=23 // pred_check_branch
        %292 = sbr.rel (%p290) target = $region36
      $region35: #{_dwconv_impl.1} parent=23 // pred_region
        %s293 = smul.u32 %s20, 16
        %s294 = sadd.s32 %s293, 16
        %p295 = scmp.lt.s32.totalorder %s294, 15
        %s296 = scalar_select %p295, %s294, 15
        %p297 = scmp.lt.s32.totalorder %s18, 1
        %s298 = scalar_select %p297, %s18, 1
        %p299 = scmp.lt.s32.totalorder %s296, 15
        %s300 = scalar_select %p299, %s296, 15
        %p301 = scmp.lt.s32.totalorder %s19, 0
        %s302 = scalar_select %p301, %s19, 0
        %s303 = smul.addr %s300, 2
        %s304 = sadd.s32 %s302, %s303
        %s305 = smul.addr %s298, 32
        %s306 = sadd.s32 %s304, %s305
        %s307 = smul.addr %s306, 8
        %s308 = scalar_lea.vmem %s2, %s307
        %s309 = smul.u32 %s20, 16
        %s310 = sadd.s32 %s309, 16
        %p311 = scmp.lt.s32.totalorder %s310, 15
        %s312 = scalar_select %p311, %s310, 15
      $region36: #{_dwconv_impl.1} parent=23 // pred_fallthru
        _
    $region24: #{_dwconv_impl.1} parent=5 // pred_fallthru
      _
    %p313 = scmp.le.s32.totalorder 1, %s11
    %p314 = scmp.lt.s32.totalorder %s11, 3
    %p315 = pnand %p313, %p314
    %p316 = pneg %p315
    // Predicated region
    $region37: #{_dwconv_impl.1} parent=5 // pred_check
      _
    $region38: #{_dwconv_impl.1} parent=5 // pred_check_branch
      %318 = sbr.rel (%p315) target = $region40
    $region39: #{_dwconv_impl.1} parent=5 // pred_region
      %s319 = ssub.s32 %s11, 1
      %s320 = smul.u32 16, %s23
      %p321 = scmp.lt.s32.totalorder %s21, 1
      %s322 = scalar_select %p321, %s21, 1
      %p323 = scmp.lt.s32.totalorder %s320, 15
      %s324 = scalar_select %p323, %s320, 15
      %p325 = scmp.lt.s32.totalorder %s22, 0
      %s326 = scalar_select %p325, %s22, 0
      %s327 = smul.addr %s324, 2
      %s328 = sadd.s32 %s326, %s327
      %s329 = smul.addr %s322, 32
      %s330 = sadd.s32 %s328, %s329
      %s331 = smul.addr %s330, 8
      %s332 = scalar_lea.vmem %s0, %s331
      %p333 = pneg %p60
      %p334 = pneg %p57
      %s335 = smul.u32 %s23, 16
      %s336 = ssub.s32 %s335, 1
      %p337 = scmp.gt.s32.totalorder %s336, 0
      %s338 = scalar_select %p337, %s336, 0
      %p339 = scmp.lt.s32.totalorder %s21, 1
      %s340 = scalar_select %p339, %s21, 1
      %p341 = scmp.lt.s32.totalorder %s338, 15
      %s342 = scalar_select %p341, %s338, 15
      %p343 = scmp.lt.s32.totalorder %s22, 0
      %s344 = scalar_select %p343, %s22, 0
      %s345 = smul.addr %s342, 2
      %s346 = sadd.s32 %s344, %s345
      %s347 = smul.addr %s340, 32
      %s348 = sadd.s32 %s346, %s347
      %s349 = smul.addr %s348, 8
      %s350 = scalar_lea.vmem %s1, %s349
      %p351 = pneg %p98
      %p352 = pneg %p95
      %s353 = smul.u32 %s23, 16
      %s354 = sadd.s32 %s353, 16
      %p355 = scmp.lt.s32.totalorder %s354, 15
      %s356 = scalar_select %p355, %s354, 15
      %p357 = scmp.lt.s32.totalorder %s21, 1
      %s358 = scalar_select %p357, %s21, 1
      %p359 = scmp.lt.s32.totalorder %s356, 15
      %s360 = scalar_select %p359, %s356, 15
      %p361 = scmp.lt.s32.totalorder %s22, 0
      %s362 = scalar_select %p361, %s22, 0
      %s363 = smul.addr %s360, 2
      %s364 = sadd.s32 %s362, %s363
      %s365 = smul.addr %s358, 32
      %s366 = sadd.s32 %s364, %s365
      %s367 = smul.addr %s366, 8
      %s368 = scalar_lea.vmem %s2, %s367
      %p369 = pneg %p136
      %p370 = pneg %p133
      %p371 = scmp.lt.s32.totalorder %s22, 0
      %s372 = scalar_select %p371, %s22, 0
      %s373 = smul.addr %s372, 8
      %s374 = scalar_lea.vmem %s3, %s373
      %p375 = pneg %p162
      %p376 = pneg %p159
      %p377 = scmp.lt.s32.totalorder %s22, 0
      %s378 = scalar_select %p377, %s22, 0
      %s379 = scalar_lea.vmem %s4, %s378
      %p380 = pneg %p188
      %p381 = pneg %p185
      %p382 = pneg %p218
      %p383 = pneg %p215
      %s384 = smul.u32 16, %s23
      %p385 = scmp.lt.s32.totalorder %s21, 1
      %s386 = scalar_select %p385, %s21, 1
      %p387 = scmp.lt.s32.totalorder %s384, 15
      %s388 = scalar_select %p387, %s384, 15
      %p389 = scmp.lt.s32.totalorder %s22, 0
      %s390 = scalar_select %p389, %s22, 0
      %s391 = smul.addr %s388, 2
      %s392 = sadd.s32 %s390, %s391
      %s393 = smul.addr %s386, 32
      %s394 = sadd.s32 %s392, %s393
      %s395 = smul.addr %s394, 8
      %s396 = scalar_lea.vmem %s5, %s395
      %s397 = smul.u32 16, %s23
      %p398 = scmp.lt.s32.totalorder %s21, 1
      %s399 = scalar_select %p398, %s21, 1
      %p400 = scmp.lt.s32.totalorder %s397, 15
      %s401 = scalar_select %p400, %s397, 15
      %p402 = scmp.lt.s32.totalorder %s22, 0
      %s403 = scalar_select %p402, %s22, 0
      %s404 = smul.addr %s401, 2
      %s405 = sadd.s32 %s403, %s404
      %s406 = smul.addr %s399, 32
      %s407 = sadd.s32 %s405, %s406
      %s408 = smul.addr %s407, 8
      %s409 = scalar_lea.vmem %s0, %s408
      %s410 = smul.u32 16, %s23
      %s411 = smul.u32 %s23, 16
      %s412 = ssub.s32 %s411, 1
      %p413 = scmp.gt.s32.totalorder %s412, 0
      %s414 = scalar_select %p413, %s412, 0
      %p415 = scmp.lt.s32.totalorder %s21, 1
      %s416 = scalar_select %p415, %s21, 1
      %p417 = scmp.lt.s32.totalorder %s414, 15
      %s418 = scalar_select %p417, %s414, 15
      %p419 = scmp.lt.s32.totalorder %s22, 0
      %s420 = scalar_select %p419, %s22, 0
      %s421 = smul.addr %s418, 2
      %s422 = sadd.s32 %s420, %s421
      %s423 = smul.addr %s416, 32
      %s424 = sadd.s32 %s422, %s423
      %s425 = smul.addr %s424, 8
      %s426 = scalar_lea.vmem %s1, %s425
      %s427 = smul.u32 %s23, 16
      %s428 = ssub.s32 %s427, 1
      %p429 = scmp.gt.s32.totalorder %s428, 0
      %s430 = scalar_select %p429, %s428, 0
      %s431 = smul.u32 %s23, 16
      %s432 = sadd.s32 %s431, 16
      %p433 = scmp.lt.s32.totalorder %s432, 15
      %s434 = scalar_select %p433, %s432, 15
      %p435 = scmp.lt.s32.totalorder %s21, 1
      %s436 = scalar_select %p435, %s21, 1
      %p437 = scmp.lt.s32.totalorder %s434, 15
      %s438 = scalar_select %p437, %s434, 15
      %p439 = scmp.lt.s32.totalorder %s22, 0
      %s440 = scalar_select %p439, %s22, 0
      %s441 = smul.addr %s438, 2
      %s442 = sadd.s32 %s440, %s441
      %s443 = smul.addr %s436, 32
      %s444 = sadd.s32 %s442, %s443
      %s445 = smul.addr %s444, 8
      %s446 = scalar_lea.vmem %s2, %s445
      %s447 = smul.u32 %s23, 16
      %s448 = sadd.s32 %s447, 16
      %p449 = scmp.lt.s32.totalorder %s448, 15
      %s450 = scalar_select %p449, %s448, 15
      %p451 = scmp.lt.s32.totalorder %s22, 0
      %s452 = scalar_select %p451, %s22, 0
      %s453 = smul.addr %s452, 8
      %s454 = scalar_lea.vmem %s3, %s453
      %p455 = scmp.lt.s32.totalorder %s22, 0
      %s456 = scalar_select %p455, %s22, 0
      %s457 = scalar_lea.vmem %s4, %s456
      %s458 = smul.u32 16, %s23
      %p459 = scmp.lt.s32.totalorder %s21, 1
      %s460 = scalar_select %p459, %s21, 1
      %p461 = scmp.lt.s32.totalorder %s458, 15
      %s462 = scalar_select %p461, %s458, 15
      %p463 = scmp.lt.s32.totalorder %s22, 0
      %s464 = scalar_select %p463, %s22, 0
      %s465 = smul.addr %s462, 2
      %s466 = sadd.s32 %s464, %s465
      %s467 = smul.addr %s460, 32
      %s468 = sadd.s32 %s466, %s467
      %s469 = smul.addr %s468, 8
      %s470 = scalar_lea.vmem %s5, %s469
      %s471 = smul.u32 16, %s23
      %v472 = vld [vmem:[%s454] sm:$0xff]
      %v473 = vld [vmem:[%s454 + $0x8] sm:$0x1]
      %v474 = vld [vmem:[%s457] sm:$0x1]
      %v475 = vlaneseq
      %v476 = vshrl.u32 %v475, 7
      %v477 = vadd.s32 %v476, 8
      %vm478 = vcmp.gt.s32.totalorder %v476, 0
      %vm479 = vcmp.gt.s32.totalorder %v477, 0
      %v480 = vsel %vm478, 1, 0
      %v481 = vsel %vm479, 1, 0
      %v482 = vcvt.s32.f32 %v480
      %v483 = vcvt.s32.f32 %v481
      %vm484 = vcmp.lt.s32.totalorder %v476, 15
      %vm485 = vcmp.lt.s32.totalorder %v477, 15
      %v486 = vsel %vm484, 1, 0
      %v487 = vsel %vm485, 1, 0
      %v488 = vcvt.s32.f32 %v486
      %v489 = vcvt.s32.f32 %v487
      %v490 = vld [vmem:[%s426] sm:$0xff]
      %v491 = vld [vmem:[%s426 + $0x8] sm:$0xff]
      %p492 = scmp.gt.s32.totalorder %s23, 0
      %s493 = scalar_select %p492, 1, 0
      %s494 = scvt.s32.f32 %s493
      %v495 = vstv %s494
      %v496 = vmul.f32 %v490, %v495
      %v497 = vmul.f32 %v491, %v495
      %v498 = vld [vmem:[%s446] sm:$0xff]
      %v499 = vld [vmem:[%s446 + $0x8] sm:$0xff]
      %p500 = scmp.lt.s32.totalorder %s23, 0
      %s501 = scalar_select %p500, 1, 0
      %s502 = scvt.s32.f32 %s501
      %v503 = vstv %s502
      %v504 = vmul.f32 %v498, %v503
      %v505 = vmul.f32 %v499, %v503
      %v506 = vld [vmem:[%s409] sm:$0xff]
      %v507 = vld [vmem:[%s409 + $0x8] sm:$0xff]
      %s508 = scalar_lea.vmem %s409, 16
      %v509 = vld [vmem:[%s508] sm:$0xff]
      %v510 = vld [vmem:[%s508 + $0x8] sm:$0xff]
      %v511 = vlaneseq
      %v512 = vshrl.u32 %v511, 7
      %v513 = vsub.s32 1, %v512
      %v514 = vrot.slane %v472, %v513
      %v515 = vmul.f32 %v496, %v514
      %v516 = vmul.f32 %v497, %v514
      %v517 = vlaneseq
      %v518 = vshrl.u32 %v517, 7
      %v519 = vsub.s32 4, %v518
      %v520 = vrot.slane %v472, %v519
      %v521 = vmul.f32 %v506, %v520
      %v522 = vmul.f32 %v507, %v520
      %v523 = vadd.f32 %v515, %v521
      %v524 = vadd.f32 %v516, %v522
      %v525 = vlaneseq
      %v526 = vshrl.u32 %v525, 7
      %v527 = vsub.s32 7, %v526
      %v528 = vrot.slane %v472, %v527
      %v529 = vmul.f32 %v509, %v528
      %v530 = vmul.f32 %v510, %v528
      %v531 = vadd.f32 %v523, %v529
      %v532 = vadd.f32 %v524, %v530
      %v534 = vlaneseq
      %v535 = vshrl.u32 %v534, 7
      %v536 = vsub.s32 0, %v535
      %v537 = vrot.slane %v474, %v536
      %v539 = vadd.f32 %v531, %v537
      %v540 = vadd.f32 %v532, %v537
      %v541 = vlaneseq
      %v542 = vshrl.u32 %v541, 7
      %v543 = vsub.s32 0, %v542
      %v544 = vrot.slane %v472, %v543
      %v545 = vmul.f32 %v496, %v544
      %v546 = vmul.f32 %v497, %v544
      %v547 = vlaneseq
      %v548 = vshrl.u32 %v547, 7
      %v549 = vsub.s32 3, %v548
      %v550 = vrot.slane %v472, %v549
      %v551 = vmul.f32 %v506, %v550
      %v552 = vmul.f32 %v507, %v550
      %v553 = vadd.f32 %v545, %v551
      %v554 = vadd.f32 %v546, %v552
      %v555 = vlaneseq
      %v556 = vshrl.u32 %v555, 7
      %v557 = vsub.s32 6, %v556
      %v558 = vrot.slane %v472, %v557
      %v559 = vmul.f32 %v509, %v558
      %v560 = vmul.f32 %v510, %v558
      %v561 = vadd.f32 %v553, %v559
      %v562 = vadd.f32 %v554, %v560
      %v563 = vlaneseq
      %v564 = vshrl.u32 %v563, 7
      %v565 = vsub.s32 2, %v564
      %v566 = vrot.slane %v472, %v565
      %v567 = vmul.f32 %v496, %v566
      %v568 = vmul.f32 %v497, %v566
      %v569 = vlaneseq
      %v570 = vshrl.u32 %v569, 7
      %v571 = vsub.s32 5, %v570
      %v572 = vrot.slane %v472, %v571
      %v573 = vmul.f32 %v506, %v572
      %v574 = vmul.f32 %v507, %v572
      %v575 = vadd.f32 %v567, %v573
      %v576 = vadd.f32 %v568, %v574
      %v577 = vlaneseq
      %v578 = vshrl.u32 %v577, 7
      %v579 = vsub.s32 0, %v578
      %v580 = vrot.slane %v473, %v579
      %v581 = vmul.f32 %v509, %v580
      %v582 = vmul.f32 %v510, %v580
      %v583 = vadd.f32 %v575, %v581
      %v584 = vadd.f32 %v576, %v582
      %v585 = vrot.slane %v561, 7
      %v586 = vrot.slane %v562, 7
      %vm587 = vcmp.lt.s32.totalorder %v476, 1
      %v588 = vsel %vm587, %v585, %v586
      %v589 = vsel %vm587, %v586, %v585
      %v590 = vmul.f32 %v589, %v482
      %v591 = vmul.f32 %v588, %v483
      %v592 = vadd.f32 %v539, %v590
      %v593 = vadd.f32 %v540, %v591
      %v594 = vrot.slane %v583, 1
      %v595 = vrot.slane %v584, 1
      %vm596 = vcmp.lt.s32.totalorder %v476, 7
      %v597 = vsel %vm596, %v594, %v595
      %v598 = vsel %vm596, %v595, %v594
      %v599 = vmul.f32 %v597, %v488
      %v600 = vmul.f32 %v598, %v489
      %v601 = vadd.f32 %v592, %v599
      %v602 = vadd.f32 %v593, %v600
      %603 = vst [vmem:[%s470] sm:$0xff] %v601
      %604 = vst [vmem:[%s470 + $0x8] sm:$0xff] %v602
      loop: start=1, step=1, limit=15
      $region41: #{_dwconv_impl.1} parent=39 // loop_pre_header
        _
      $region42: #{_dwconv_impl.1} parent=39 // loop_header
        %s606 = sphi 1, %s610
        %p607 = scmp.ge.s32.totalorder %s606, 15
      $region43: #{_dwconv_impl.1} parent=39 // loop_header_branch
        %609 = sbr.rel (%p607) target = $region47
      $region44: #{_dwconv_impl.1} parent=39 // loop_body
        %s611 = ssub.s32 %s606, 1
        %s612 = smul.u32 %s611, 16
        %s613 = scalar_lea.vmem %s409, %s612
        %v614 = vld [vmem:[%s613] sm:$0xff]
        %v615 = vld [vmem:[%s613 + $0x8] sm:$0xff]
        %s616 = smul.u32 %s606, 16
        %s617 = scalar_lea.vmem %s409, %s616
        %v618 = vld [vmem:[%s617] sm:$0xff]
        %v619 = vld [vmem:[%s617 + $0x8] sm:$0xff]
        %s620 = sadd.s32 %s606, 1
        %s621 = smul.u32 %s620, 16
        %s622 = scalar_lea.vmem %s409, %s621
        %v623 = vld [vmem:[%s622] sm:$0xff]
        %v624 = vld [vmem:[%s622 + $0x8] sm:$0xff]
        %v625 = vmul.f32 %v614, %v514
        %v626 = vmul.f32 %v615, %v514
        %v627 = vmul.f32 %v618, %v520
        %v628 = vmul.f32 %v619, %v520
        %v629 = vadd.f32 %v625, %v627
        %v630 = vadd.f32 %v626, %v628
        %v631 = vmul.f32 %v623, %v528
        %v632 = vmul.f32 %v624, %v528
        %v633 = vadd.f32 %v629, %v631
        %v634 = vadd.f32 %v630, %v632
        %v635 = vadd.f32 %v633, %v537
        %v636 = vadd.f32 %v634, %v537
        %v637 = vmul.f32 %v614, %v544
        %v638 = vmul.f32 %v615, %v544
        %v639 = vmul.f32 %v618, %v550
        %v640 = vmul.f32 %v619, %v550
        %v641 = vadd.f32 %v637, %v639
        %v642 = vadd.f32 %v638, %v640
        %v643 = vmul.f32 %v623, %v558
        %v644 = vmul.f32 %v624, %v558
        %v645 = vadd.f32 %v641, %v643
        %v646 = vadd.f32 %v642, %v644
        %v647 = vmul.f32 %v614, %v566
        %v648 = vmul.f32 %v615, %v566
        %v649 = vmul.f32 %v618, %v572
        %v650 = vmul.f32 %v619, %v572
        %v651 = vadd.f32 %v647, %v649
        %v652 = vadd.f32 %v648, %v650
        %v653 = vmul.f32 %v623, %v580
        %v654 = vmul.f32 %v624, %v580
        %v655 = vadd.f32 %v651, %v653
        %v656 = vadd.f32 %v652, %v654
        %v657 = vrot.slane %v645, 7
        %v658 = vrot.slane %v646, 7
        %v659 = vsel %vm587, %v657, %v658
        %v660 = vsel %vm587, %v658, %v657
        %v661 = vmul.f32 %v660, %v482
        %v662 = vmul.f32 %v659, %v483
        %v663 = vadd.f32 %v635, %v661
        %v664 = vadd.f32 %v636, %v662
        %v665 = vrot.slane %v655, 1
        %v666 = vrot.slane %v656, 1
        %v667 = vsel %vm596, %v665, %v666
        %v668 = vsel %vm596, %v666, %v665
        %v669 = vmul.f32 %v667, %v488
        %v670 = vmul.f32 %v668, %v489
        %v671 = vadd.f32 %v663, %v669
        %v672 = vadd.f32 %v664, %v670
        %s673 = scalar_lea.vmem %s470, %s616
        %674 = vst [vmem:[%s673] sm:$0xff] %v671
        %675 = vst [vmem:[%s673 + $0x8] sm:$0xff] %v672
      $region45: #{_dwconv_impl.1} parent=39 // loop_footer
        %s610 = sadd.s32 1, %s606
      $region46: #{_dwconv_impl.1} parent=39 // loop_footer_branch
        %605 = sbr.rel target = $region42
      $region47: #{_dwconv_impl.1} parent=39 // loop_exit
        _
      %s676 = scalar_lea.vmem %s409, 224
      %v677 = vld [vmem:[%s676] sm:$0xff]
      %v678 = vld [vmem:[%s676 + $0x8] sm:$0xff]
      %s679 = scalar_lea.vmem %s409, 240
      %v680 = vld [vmem:[%s679] sm:$0xff]
      %v681 = vld [vmem:[%s679 + $0x8] sm:$0xff]
      %v682 = vmul.f32 %v677, %v514
      %v683 = vmul.f32 %v678, %v514
      %v684 = vmul.f32 %v680, %v520
      %v685 = vmul.f32 %v681, %v520
      %v686 = vadd.f32 %v682, %v684
      %v687 = vadd.f32 %v683, %v685
      %v688 = vmul.f32 %v504, %v528
      %v689 = vmul.f32 %v505, %v528
      %v690 = vadd.f32 %v686, %v688
      %v691 = vadd.f32 %v687, %v689
      %v692 = vadd.f32 %v690, %v537
      %v693 = vadd.f32 %v691, %v537
      %v694 = vmul.f32 %v677, %v544
      %v695 = vmul.f32 %v678, %v544
      %v696 = vmul.f32 %v680, %v550
      %v697 = vmul.f32 %v681, %v550
      %v698 = vadd.f32 %v694, %v696
      %v699 = vadd.f32 %v695, %v697
      %v700 = vmul.f32 %v504, %v558
      %v701 = vmul.f32 %v505, %v558
      %v702 = vadd.f32 %v698, %v700
      %v703 = vadd.f32 %v699, %v701
      %v704 = vmul.f32 %v677, %v566
      %v705 = vmul.f32 %v678, %v566
      %v706 = vmul.f32 %v680, %v572
      %v707 = vmul.f32 %v681, %v572
      %v708 = vadd.f32 %v704, %v706
      %v709 = vadd.f32 %v705, %v707
      %v710 = vmul.f32 %v504, %v580
      %v711 = vmul.f32 %v505, %v580
      %v712 = vadd.f32 %v708, %v710
      %v713 = vadd.f32 %v709, %v711
      %v714 = vrot.slane %v702, 7
      %v715 = vrot.slane %v703, 7
      %v716 = vsel %vm587, %v714, %v715
      %v717 = vsel %vm587, %v715, %v714
      %v718 = vmul.f32 %v717, %v482
      %v719 = vmul.f32 %v716, %v483
      %v720 = vadd.f32 %v692, %v718
      %v721 = vadd.f32 %v693, %v719
      %v722 = vrot.slane %v712, 1
      %v723 = vrot.slane %v713, 1
      %v724 = vsel %vm596, %v722, %v723
      %v725 = vsel %vm596, %v723, %v722
      %v726 = vmul.f32 %v724, %v488
      %v727 = vmul.f32 %v725, %v489
      %v728 = vadd.f32 %v720, %v726
      %v729 = vadd.f32 %v721, %v727
      %s730 = scalar_lea.vmem %s470, 240
      %731 = vst [vmem:[%s730] sm:$0xff] %v728
      %732 = vst [vmem:[%s730 + $0x8] sm:$0xff] %v729
      %s733 = smul.u32 16, %s23
      %p734 = scmp.lt.s32.totalorder %s21, 1
      %s735 = scalar_select %p734, %s21, 1
      %p736 = scmp.lt.s32.totalorder %s733, 15
      %s737 = scalar_select %p736, %s733, 15
      %p738 = scmp.lt.s32.totalorder %s22, 0
      %s739 = scalar_select %p738, %s22, 0
      %s740 = smul.addr %s737, 2
      %s741 = sadd.s32 %s739, %s740
      %s742 = smul.addr %s735, 32
      %s743 = sadd.s32 %s741, %s742
      %s744 = smul.addr %s743, 8
      %s745 = scalar_lea.vmem %s5, %s744
      // Predicated region
      $region48: #{_dwconv_impl.1} parent=39 // pred_check
        %p746 = pneg %p215
      $region49: #{_dwconv_impl.1} parent=39 // pred_check_branch
        %748 = sbr.rel (%p746) target = $region51
      $region50: #{_dwconv_impl.1} parent=39 // pred_region
        %s749 = smul.u32 16, %s23
      $region51: #{_dwconv_impl.1} parent=39 // pred_fallthru
        _
    $region40: #{_dwconv_impl.1} parent=5 // pred_fallthru
      _
    %p750 = scmp.le.s32.totalorder 2, %s11
    // Predicated region
    $region52: #{_dwconv_impl.1} parent=5 // pred_check
      %p751 = pneg %p750
    $region53: #{_dwconv_impl.1} parent=5 // pred_check_branch
      %753 = sbr.rel (%p751) target = $region55
    $region54: #{_dwconv_impl.1} parent=5 // pred_region
      %s754 = ssub.s32 %s11, 2
      // Predicated region
      $region56: #{_dwconv_impl.1} parent=54 // pred_check
        %p755 = pneg %p221
      $region57: #{_dwconv_impl.1} parent=54 // pred_check_branch
        %757 = sbr.rel (%p755) target = $region59
      $region58: #{_dwconv_impl.1} parent=54 // pred_region
        %s758 = smul.u32 16, %s26
        %p759 = scmp.lt.s32.totalorder %s24, 1
        %s760 = scalar_select %p759, %s24, 1
        %p761 = scmp.lt.s32.totalorder %s758, 15
        %s762 = scalar_select %p761, %s758, 15
        %p763 = scmp.lt.s32.totalorder %s25, 0
        %s764 = scalar_select %p763, %s25, 0
        %s765 = smul.addr %s762, 2
        %s766 = sadd.s32 %s764, %s765
        %s767 = smul.addr %s760, 32
        %s768 = sadd.s32 %s766, %s767
        %s769 = smul.addr %s768, 8
        %s770 = scalar_lea.vmem %s5, %s769
      $region59: #{_dwconv_impl.1} parent=54 // pred_fallthru
        _
    $region55: #{_dwconv_impl.1} parent=5 // pred_fallthru
      _
  $region6: #{_dwconv_impl.1} parent=0 // loop_footer
    %s15 = sadd.s32 1, %s11
  $region7: #{_dwconv_impl.1} parent=0 // loop_footer_branch
    %10 = sbr.rel target = $region3
  $region8: #{_dwconv_impl.1} parent=0 // loop_exit
    _

</llo_original>
